<compile_context>
chip_gen: v6e
topology: v6e:2x2x1
jax: 0.10.0
libtpu: 0.0.40
codegen_flags: <defaults>
</compile_context>

<pallas_src>
import functools
import math

import numpy as np
import jax
import jax.numpy as jnp
from jax import lax
from jax.experimental import pallas as pl
from jax.experimental.pallas import tpu as pltpu


# ----------------------------- host-side glue -------------------------------

def classify_height_width_bin(height, width, ratios):
    """Exact port of the reference function."""
    ar = float(height / width)
    closest_ratio = min(ratios.keys(), key=lambda r: abs(float(r) - ar))
    default_hw = ratios[closest_ratio]
    return int(default_hw[0]), int(default_hw[1])


def scm_set_timesteps(num_inference_steps, max_timesteps=1.5708,
                      intermediate_timesteps=1.3, timesteps=None):
    """SCMScheduler.set_timesteps semantics (trigflow: t in [0, pi/2])."""
    if timesteps is not None:
        ts = list(timesteps)
        if ts[-1] != 0.0:
            ts = ts + [0.0]
        return np.asarray(ts, dtype=np.float32)
    if num_inference_steps == 2 and intermediate_timesteps is not None:
        return np.asarray([max_timesteps, intermediate_timesteps, 0.0],
                          dtype=np.float32)
    return np.linspace(max_timesteps, 0.0, num_inference_steps + 1).astype(np.float32)


# ----------------------------- Pallas kernel --------------------------------

def _scm_fused_kernel(scal_ref, wbd_ref, mask_ref, init_ref, addt_ref, fin_ref,
                      out_ref, *, steps):
    """All SCM inpainting steps fused; no grid — one in-kernel fori_loop.

    scal_ref  SMEM f32[4*T + 2] : per step [cos(s), sin(s)*t_mod, cos(t_next), 0],
                                  then [sigma, 1/sigma]
    wbd_ref   VMEM f32[BC, BC]  : block-diagonal proxy model weights
    mask_ref  VMEM f32[1, HW]   : latent-grid mask (broadcast in-kernel)
    init_ref  VMEM f32[BC, HW]  : raw N(0,1) initial latents (scaled by sigma here)
    addt_ref  VMEM f32[T-1, BC, HW] : per-step additive constant
                                  cos(t_next)*(msrc - sin(s)*bterm) + sin(t_next)*sigma*noise
    fin_ref   VMEM f32[BC, HW]  : (msrc - sin(s_last)*bterm) / sigma
    out_ref   VMEM f32[BC, HW]  : final sample = denoised / sigma
    """
    sigma = scal_ref[4 * steps]
    inv_sigma = scal_ref[4 * steps + 1]

    wbd = wbd_ref[...]                                        # (BC, BC)
    maskb = jnp.broadcast_to(mask_ref[...], init_ref.shape)   # hoisted, loop-invariant
    lat = sigma * init_ref[...]                               # (BC, HW) in registers

    def step(i, lat):
        cos_s = scal_ref[4 * i + 0]
        sst = scal_ref[4 * i + 1]        # sin(s) * t_mod
        cos_tn = scal_ref[4 * i + 2]
        # block-diagonal channel mix on the MXU (full-width, no masked stores)
        h = jnp.dot(wbd, lat, preferred_element_type=jnp.float32,
                    precision=lax.Precision.HIGHEST)
        core = cos_s * lat - sst * h
        return cos_tn * (maskb * core) + addt_ref[i]

    lat = lax.fori_loop(0, steps - 1, step, lat, unroll=True)

    # last step: only `denoised / sigma` is needed (latents update is dead code)
    last = steps - 1
    cos_s = scal_ref[4 * last + 0]
    sst = scal_ref[4 * last + 1]
    h = jnp.dot(wbd, lat, preferred_element_type=jnp.float32,
                precision=lax.Precision.HIGHEST)
    core = cos_s * lat - sst * h
    out_ref[...] = fin_ref[...] + inv_sigma * (maskb * core)


def scm_denoise_fused(scal, wbd, mask_flat, init_raw, addt, fin):
    """scal: (4T+2,) f32; wbd: (BC,BC); mask: (1,HW); init/fin: (BC,HW);
    addt: (max(T-1,1), BC, HW)."""
    BC, HW = init_raw.shape
    steps = (scal.shape[0] - 2) // 4
    kernel = functools.partial(_scm_fused_kernel, steps=steps)
    vmem = pltpu.MemorySpace.VMEM
    smem = pltpu.MemorySpace.SMEM
    return pl.pallas_call(
        kernel,
        out_shape=jax.ShapeDtypeStruct((BC, HW), jnp.float32),
        in_specs=[
            pl.BlockSpec(memory_space=smem),   # scalar table
            pl.BlockSpec(memory_space=vmem),   # block-diag weights
            pl.BlockSpec(memory_space=vmem),   # mask (1, HW)
            pl.BlockSpec(memory_space=vmem),   # initial raw normals
            pl.BlockSpec(memory_space=vmem),   # per-step additive constants
            pl.BlockSpec(memory_space=vmem),   # final-step constant
        ],
        out_specs=pl.BlockSpec(memory_space=vmem),
    )(scal, wbd, mask_flat, init_raw, addt, fin)


# ----------------------------- pipeline wrapper ------------------------------

class SanaSprintInpaintJAX:
    """JAX/Pallas port of SanaSprintInpaintingPipeline.forward (latent-space)."""

    def __init__(self, image_size=128, vae_downsample_rate=8, latent_dim=4,
                 caption_dim=32, sigma_data=0.5, seed=0):
        self.image_size = image_size
        self.vae_downsample_rate = vae_downsample_rate
        self.latent_size = image_size // vae_downsample_rate
        self.sigma_data = float(sigma_data)
        self.base_ratios = {"1.0": [image_size, image_size]}
        self.max_timesteps = 1.5708
        self.intermediate_timesteps = 1.3
        self.latent_dim = latent_dim
        self.caption_dim = caption_dim

        key = jax.random.PRNGKey(seed)
        k1, k2, k3 = jax.random.split(key, 3)
        C = latent_dim
        # Deterministic synthetic parameters for the proxy model.
        self.w_model = (jnp.eye(C, dtype=jnp.float32)
                        + 0.05 * jax.random.normal(k1, (C, C), dtype=jnp.float32))
        self.b_model = 0.01 * jax.random.normal(k2, (C,), dtype=jnp.float32)
        self.w_caption = 0.02 * jax.random.normal(
            k3, (caption_dim, C), dtype=jnp.float32)

        self._run = jax.jit(self._run_impl)   # whole device path is jitted

    def _run_impl(self, scal, coefs, last_s, src_latent, mask_image,
                  caption_embs, init_raw, noise_raw):
        B, C, Lh, Lw = src_latent.shape
        HW = Lh * Lw
        sigma = self.sigma_data

        # mask: (H, W) -> latent grid, bilinear (half-pixel == align_corners=False)
        m = jax.image.resize(mask_image.astype(jnp.float32)[None, None],
                             (1, 1, Lh, Lw), method="bilinear")
        mask_flat = m.reshape(1, HW)                                    # (1, HW)

        # caption-conditioned per-channel bias (proxy for cross-attention cond.)
        cap_bias = (jnp.mean(caption_embs.astype(jnp.float32), axis=1)
                    @ self.w_caption + self.b_model[None, :])           # (B, C)

        # step-invariant (sigma-free) building blocks in (B*C, HW) layout
        src = src_latent.astype(jnp.float32).reshape(B, C, HW)
        inv_src = ((1.0 - mask_flat)[None] * src).reshape(B * C, HW)     # (1-m)*src
        mcap = (mask_flat[None] * cap_bias[:, :, None]).reshape(B * C, HW)  # m*bias

        # per-step additive constant (one fused XLA elementwise pass)
        a = (coefs[:, 0] * sigma)[:, None, None]    # cos(t_next) * sigma
        b = coefs[:, 1][:, None, None]              # sin(t_next) * sigma
        c = coefs[:, 2][:, None, None]              # sin(s)
        addt = a * (inv_src[None] - c * mcap[None]) + b * noise_raw
        # final-step constant: (msrc - sin(s_last)*bterm) / sigma
        fin = inv_src - last_s[0] * mcap

        # block-diagonal proxy weights, one per batch element
        wbd = jnp.kron(jnp.eye(B, dtype=jnp.float32), self.w_model)     # (BC, BC)

        sample = scm_denoise_fused(scal, wbd, mask_flat, init_raw, addt, fin)
        return sample.reshape(B, C, Lh, Lw)

    def __call__(self, src_latent, mask_image, caption_embs,
                 height=128, width=128, num_inference_steps=2,
                 use_resolution_binning=True, rng=None):
        if rng is None:
            rng = jax.random.PRNGKey(42)

        # resolution binning (same semantics as the reference)
        if use_resolution_binning:
            self.height, self.width = classify_height_width_bin(
                height, width, ratios=self.base_ratios)
        else:
            self.height, self.width = height, width
        self.latent_size_h = self.height // self.vae_downsample_rate
        self.latent_size_w = self.width // self.vae_downsample_rate

        B, C, Lh, Lw = src_latent.shape
        assert (Lh, Lw) == (self.latent_size_h, self.latent_size_w)
        HW = Lh * Lw
        sigma = self.sigma_data

        # SCM scheduler
        timesteps = scm_set_timesteps(
            num_inference_steps, max_timesteps=self.max_timesteps,
            intermediate_timesteps=self.intermediate_timesteps, timesteps=None)
        T = len(timesteps) - 1
        Tm1 = max(T - 1, 1)

        # 1D SMEM scalar table + small coefficient table for the wrapper
        scal = np.zeros(4 * T + 2, dtype=np.float32)
        coefs = np.zeros((Tm1, 3), dtype=np.float32)
        for i in range(T):
            s = float(timesteps[i])
            tn = float(timesteps[i + 1])
            t_mod = 1.0 + 0.5 * math.sin(s)     # proxy timestep modulation
            scal[4 * i + 0] = math.cos(s)
            scal[4 * i + 1] = math.sin(s) * t_mod
            scal[4 * i + 2] = math.cos(tn)
            if i < T - 1:
                coefs[i, 0] = math.cos(tn)
                coefs[i, 1] = math.sin(tn) * sigma
                coefs[i, 2] = math.sin(s)
        scal[4 * T] = sigma
        scal[4 * T + 1] = 1.0 / sigma
        last_s = np.asarray([math.sin(float(timesteps[T - 1]))], dtype=np.float32)

        # raw normals (sigma folded in on-device / in-kernel)
        k_lat, k_noise = jax.random.split(rng)
        init_raw = jax.random.normal(k_lat, (B * C, HW), dtype=jnp.float32)
        noise_full = jax.random.normal(k_noise, (T, B * C, HW), dtype=jnp.float32)
        if T > 1:
            noise_raw = noise_full[:T - 1]
        else:
            noise_raw = jnp.zeros((1, B * C, HW), dtype=jnp.float32)

        # TODO(synk): vae_decode + resize_and_crop_tensor omitted (external VAE);
        # returning the latent-space sample (denoised / sigma_data) instead.
        return self._run(jnp.asarray(scal), jnp.asarray(coefs),
                         jnp.asarray(last_s), src_latent, mask_image,
                         caption_embs, init_raw, noise_raw)


# ----------------------------- pure-JAX reference ----------------------------

def reference_forward(pipe, src_latent, mask_image, caption_embs,
                      height, width, num_inference_steps, rng):
    """Un-fused jnp re-implementation of the same forward, for verification."""
    h_bin, w_bin = classify_height_width_bin(height, width, pipe.base_ratios)
    Lh = h_bin // pipe.vae_downsample_rate
    Lw = w_bin // pipe.vae_downsample_rate
    B, C, _, _ = src_latent.shape
    HW = Lh * Lw
    sigma = pipe.sigma_data

    m = jax.image.resize(jnp.asarray(mask_image, jnp.float32)[None, None],
                         (1, 1, Lh, Lw), method="bilinear")
    timesteps = scm_set_timesteps(num_inference_steps,
                                  max_timesteps=pipe.max_timesteps,
                                  intermediate_timesteps=pipe.intermediate_timesteps)
    T = len(timesteps) - 1

    k_lat, k_noise = jax.random.split(rng)
    lat = (sigma * jax.random.normal(k_lat, (B * C, HW), dtype=jnp.float32)
           ).reshape(B, C, Lh, Lw)
    noise_all = (sigma * jax.random.normal(k_noise, (T, B * C, HW),
                                           dtype=jnp.float32)
                 ).reshape(T, B, C, Lh, Lw)
    cap_bias = (jnp.mean(caption_embs.astype(jnp.float32), axis=1)
                @ pipe.w_caption + pipe.b_model[None, :])        # (B, C)
    src = src_latent.astype(jnp.float32)

    den = src * sigma
    for i in range(T):
        s = float(timesteps[i])
        tn = float(timesteps[i + 1])
        t_mod = 1.0 + 0.5 * math.sin(s)
        x_in = lat / sigma
        h = jnp.einsum("ck,bkhw->bchw", pipe.w_model, x_in)
        model_pred = sigma * (h * t_mod + cap_bias[:, :, None, None])
        pred_x0 = math.cos(s) * lat - math.sin(s) * model_pred
        den = (1.0 - m) * src * sigma + m * pred_x0
        lat = math.cos(tn) * den + math.sin(tn) * noise_all[i]
    return den / sigma


# --------------------------------- main --------------------------------------

if __name__ == "__main__":
    key = jax.random.PRNGKey(0)
    k_src, k_cap, k_mask, k_run = jax.random.split(key, 4)

    B, C, L = 2, 4, 16           # batch, vae_latent_dim, latent spatial
    image_size = 128             # -> latent_size = 128 // 8 = 16
    seq_len, cap_dim = 8, 32

    pipe = SanaSprintInpaintJAX(image_size=image_size, vae_downsample_rate=8,
                                latent_dim=C, caption_dim=cap_dim,
                                sigma_data=0.5, seed=0)

    src_latent = jax.random.normal(k_src, (B, C, L, L), dtype=jnp.float32)
    caption_embs = jax.random.normal(k_cap, (B, seq_len, cap_dim),
                                     dtype=jnp.float32)
    mask_image = (jax.random.uniform(k_mask, (image_size, image_size)) > 0.5
                  ).astype(jnp.float32)

    out = pipe(src_latent, mask_image, caption_embs,
               height=image_size, width=image_size,
               num_inference_steps=2, use_resolution_binning=True,
               rng=k_run)
    out = jax.block_until_ready(out)
    assert out.shape == (B, C, L, L) and bool(jnp.all(jnp.isfinite(out)))

    ref = reference_forward(pipe, src_latent, mask_image, caption_embs,
                            image_size, image_size, 2, k_run)
    assert bool(jnp.allclose(out, ref, atol=2e-4, rtol=2e-4)), \
        float(jnp.max(jnp.abs(out - ref)))

    print("KERNEL_OK")
</pallas_src>

<mosaic_0001>
module attributes {stable_mosaic.version = 11 : i64} {
  func.func @_scm_fused_kernel(%arg0: memref<10xf32, #tpu.memory_space<smem>>, %arg1: memref<8x8xf32, #tpu.memory_space<vmem>>, %arg2: memref<1x256xf32, #tpu.memory_space<vmem>>, %arg3: memref<8x256xf32, #tpu.memory_space<vmem>>, %arg4: memref<1x8x256xf32, #tpu.memory_space<vmem>>, %arg5: memref<8x256xf32, #tpu.memory_space<vmem>>, %arg6: memref<8x256xf32, #tpu.memory_space<vmem>>) attributes {dimension_semantics = [], scalar_prefetch = 0 : i64, scratch_operands = 0 : i64, tpu.core_type = #tpu.core_type<tc>} {
    %c8 = arith.constant 8 : index
    %0 = memref.load %arg0[%c8] : memref<10xf32, #tpu.memory_space<smem>>
    %c9 = arith.constant 9 : index
    %1 = memref.load %arg0[%c9] : memref<10xf32, #tpu.memory_space<smem>>
    %c0 = arith.constant 0 : index
    %c0_0 = arith.constant 0 : index
    %2 = vector.load %arg1[%c0, %c0_0] : memref<8x8xf32, #tpu.memory_space<vmem>>, vector<8x8xf32>
    %c0_1 = arith.constant 0 : index
    %c0_2 = arith.constant 0 : index
    %3 = vector.load %arg2[%c0_1, %c0_2] : memref<1x256xf32, #tpu.memory_space<vmem>>, vector<1x256xf32>
    %4 = vector.shape_cast %3 : vector<1x256xf32> to vector<1x256xf32>
    %5 = vector.broadcast %4 : vector<1x256xf32> to vector<8x256xf32>
    %c0_3 = arith.constant 0 : index
    %c0_4 = arith.constant 0 : index
    %6 = vector.load %arg3[%c0_3, %c0_4] : memref<8x256xf32, #tpu.memory_space<vmem>>, vector<8x256xf32>
    %7 = vector.broadcast %0 : f32 to vector<8x256xf32>
    %8 = arith.mulf %7, %6 : vector<8x256xf32>
    %c0_i32 = arith.constant 0 : i32
    %c4_i32 = arith.constant 4 : i32
    %9 = arith.muli %c4_i32, %c0_i32 : i32
    %c0_i32_5 = arith.constant 0 : i32
    %10 = arith.addi %9, %c0_i32_5 : i32
    %11 = arith.index_cast %10 : i32 to index
    %12 = memref.load %arg0[%11] : memref<10xf32, #tpu.memory_space<smem>>
    %c4_i32_6 = arith.constant 4 : i32
    %13 = arith.muli %c4_i32_6, %c0_i32 : i32
    %c1_i32 = arith.constant 1 : i32
    %14 = arith.addi %13, %c1_i32 : i32
    %15 = arith.index_cast %14 : i32 to index
    %16 = memref.load %arg0[%15] : memref<10xf32, #tpu.memory_space<smem>>
    %c4_i32_7 = arith.constant 4 : i32
    %17 = arith.muli %c4_i32_7, %c0_i32 : i32
    %c2_i32 = arith.constant 2 : i32
    %18 = arith.addi %17, %c2_i32 : i32
    %19 = arith.index_cast %18 : i32 to index
    %20 = memref.load %arg0[%19] : memref<10xf32, #tpu.memory_space<smem>>
    %cst = arith.constant dense<0.000000e+00> : vector<8x256xf32>
    %21 = tpu.matmul %2, %8, %cst {dimension_numbers = #tpu.dot_dimension_numbers<[1], [0], [0], [1], [0, 0, 1, 1], [], []>, precision = #tpu.contract_precision<fp32>} : vector<8x8xf32>, vector<8x256xf32>, vector<8x256xf32> -> vector<8x256xf32>
    %22 = vector.broadcast %12 : f32 to vector<8x256xf32>
    %23 = arith.mulf %22, %8 : vector<8x256xf32>
    %24 = vector.broadcast %16 : f32 to vector<8x256xf32>
    %25 = arith.mulf %24, %21 : vector<8x256xf32>
    %26 = arith.subf %23, %25 : vector<8x256xf32>
    %27 = arith.mulf %5, %26 : vector<8x256xf32>
    %28 = vector.broadcast %20 : f32 to vector<8x256xf32>
    %29 = arith.mulf %28, %27 : vector<8x256xf32>
    %30 = arith.index_cast %c0_i32 : i32 to index
    %c0_8 = arith.constant 0 : index
    %c0_9 = arith.constant 0 : index
    %31 = vector.load %arg4[%30, %c0_8, %c0_9] : memref<1x8x256xf32, #tpu.memory_space<vmem>>, vector<1x8x256xf32>
    %32 = vector.shape_cast %31 : vector<1x8x256xf32> to vector<8x256xf32>
    %33 = arith.addf %29, %32 : vector<8x256xf32>
    %c1_i32_10 = arith.constant 1 : i32
    %c4 = arith.constant 4 : index
    %34 = memref.load %arg0[%c4] : memref<10xf32, #tpu.memory_space<smem>>
    %c5 = arith.constant 5 : index
    %35 = memref.load %arg0[%c5] : memref<10xf32, #tpu.memory_space<smem>>
    %cst_11 = arith.constant dense<0.000000e+00> : vector<8x256xf32>
    %36 = tpu.matmul %2, %33, %cst_11 {dimension_numbers = #tpu.dot_dimension_numbers<[1], [0], [0], [1], [0, 0, 1, 1], [], []>, precision = #tpu.contract_precision<fp32>} : vector<8x8xf32>, vector<8x256xf32>, vector<8x256xf32> -> vector<8x256xf32>
    %37 = vector.broadcast %34 : f32 to vector<8x256xf32>
    %38 = arith.mulf %37, %33 : vector<8x256xf32>
    %39 = vector.broadcast %35 : f32 to vector<8x256xf32>
    %40 = arith.mulf %39, %36 : vector<8x256xf32>
    %41 = arith.subf %38, %40 : vector<8x256xf32>
    %c0_12 = arith.constant 0 : index
    %c0_13 = arith.constant 0 : index
    %42 = vector.load %arg5[%c0_12, %c0_13] : memref<8x256xf32, #tpu.memory_space<vmem>>, vector<8x256xf32>
    %43 = arith.mulf %5, %41 : vector<8x256xf32>
    %44 = vector.broadcast %1 : f32 to vector<8x256xf32>
    %45 = arith.mulf %44, %43 : vector<8x256xf32>
    %46 = arith.addf %42, %45 : vector<8x256xf32>
    %c0_14 = arith.constant 0 : index
    %c0_15 = arith.constant 0 : index
    %47 = vector.load %arg6[%c0_14, %c0_15] : memref<8x256xf32, #tpu.memory_space<vmem>>, vector<8x256xf32>
    tpu.vector_store %arg6[%c0_14, %c0_15], %46 {strides = array<i32>} : memref<8x256xf32, #tpu.memory_space<vmem>>, vector<8x256xf32>,
    return
  }
}

</mosaic_0001>

<llo_original>
// kernel: _run_impl.1
$region0: #{_run_impl.1}
  #allocation0 [shape = 'u32[]', space=smem, size = 0x4, offset = 0x4, fixed_abs, tag = 'smem constant byte address 0x4 - core index']
  #allocation1 [shape = 'u32[144,128]{1,0:T(1,128)}', space=vmem, size = 0x12000, scoped, tag = 'internal scratch']
  %s0 = inlined_call_operand.vmem [shape: f32[10], index: 0, kind: input, shape index: {}]
  %s1 = inlined_call_operand.vmem [shape: f32[8,8], index: 1, kind: input, shape index: {}]
  %s2 = inlined_call_operand.vmem [shape: f32[1,256], index: 2, kind: input, shape index: {}]
  %s3 = inlined_call_operand.vmem [shape: f32[8,256], index: 3, kind: input, shape index: {}]
  %s4 = inlined_call_operand.vmem [shape: f32[1,8,256], index: 4, kind: input, shape index: {}]
  %s5 = inlined_call_operand.vmem [shape: f32[8,256], index: 5, kind: input, shape index: {}]
  %s6 = inlined_call_operand.vmem [shape: f32[8,256], index: 6, kind: output, shape index: {}]
  %s7 = sld [smem:[#allocation0]]
  $region38: #{_run_impl.1} parent=0
    _
  %s9 = ssub.s32 1, %s7
  %s10 = scalar_select 0, %s9, %s7
  $region1: #{_run_impl.1} parent=0
    #allocation2 [shape = 'u8[512]{0}', space=smem, size = 0x200, scoped, tag = 'input window, operand 0, single buffered']
    #allocation3 [shape = 's32[1]{0}', space=sflag, size = 0x4, scoped, tag = 'scoped memory for _run_impl.1']
    %11 = vsyncpa [#allocation3], 0
    // Predicated region
    $region2: #{_run_impl.1} parent=1 // pred_check
      _
    $region3: #{_run_impl.1} parent=1 // pred_check_branch
      %13 = sbr.rel (0) target = $region5
    $region4: #{_run_impl.1} parent=1 // pred_region
      %s15 = ssub.s32 16, 16
      %16 = vsyncadd [#allocation3], %s15
      %s18 = sshll.u32 %s0, 4
      %s19 = int_to_ptr.vmem [resolvable:$true] %s18
      %21 = dma.vmem_to_smem %s19, 16, [#allocation2], [#allocation3]
    $region5: #{_run_impl.1} parent=1 // pred_fallthru
      _
    // Predicated region
    $region6: #{_run_impl.1} parent=1 // pred_check
      _
    $region7: #{_run_impl.1} parent=1 // pred_check_branch
      %23 = sbr.rel (0) target = $region9
    $region8: #{_run_impl.1} parent=1 // pred_region
      _
    $region9: #{_run_impl.1} parent=1 // pred_fallthru
      _
    // Predicated region
    $region10: #{_run_impl.1} parent=1 // pred_check
      _
    $region11: #{_run_impl.1} parent=1 // pred_check_branch
      %25 = sbr.rel (0) target = $region13
    $region12: #{_run_impl.1} parent=1 // pred_region
      _
    $region13: #{_run_impl.1} parent=1 // pred_fallthru
      _
    // Predicated region
    $region14: #{_run_impl.1} parent=1 // pred_check
      _
    $region15: #{_run_impl.1} parent=1 // pred_check_branch
      %27 = sbr.rel (0) target = $region17
    $region16: #{_run_impl.1} parent=1 // pred_region
      _
    $region17: #{_run_impl.1} parent=1 // pred_fallthru
      _
    // Predicated region
    $region18: #{_run_impl.1} parent=1 // pred_check
      _
    $region19: #{_run_impl.1} parent=1 // pred_check_branch
      %29 = sbr.rel (0) target = $region21
    $region20: #{_run_impl.1} parent=1 // pred_region
      _
    $region21: #{_run_impl.1} parent=1 // pred_fallthru
      _
    // Predicated region
    $region22: #{_run_impl.1} parent=1 // pred_check
      _
    $region23: #{_run_impl.1} parent=1 // pred_check_branch
      %31 = sbr.rel (0) target = $region25
    $region24: #{_run_impl.1} parent=1 // pred_region
      _
    $region25: #{_run_impl.1} parent=1 // pred_fallthru
      _
    // Predicated region
    $region26: #{_run_impl.1} parent=1 // pred_check
      _
    $region27: #{_run_impl.1} parent=1 // pred_check_branch
      %33 = sbr.rel (0) target = $region29
    $region28: #{_run_impl.1} parent=1 // pred_region
      %34 = dma.done [#allocation3], 16
    $region29: #{_run_impl.1} parent=1 // pred_fallthru
      _
    %35 = sfence
    %s36 = sld [smem:[#allocation2 + $0x8]]
    %s37 = sld [smem:[#allocation2 + $0x9]]
    %v38 = vld [vmem:[%s1] sm:$0xff]
    %v39 = vld [vmem:[%s2] sm:$0x3]
    %v41 = vlaneseq
    %v42 = vshrl.u32 %v41, 7
    %v43 = vsub.s32 0, %v42
    %v44 = vrot.slane %v39, %v43
    %v45 = vlaneseq
    %v46 = vshrl.u32 %v45, 7
    %v47 = vsub.s32 1, %v46
    %v48 = vrot.slane %v39, %v47
    %v51 = vld [vmem:[%s3] sm:$0xff]
    %v52 = vld [vmem:[%s3 + $0x8] sm:$0xff]
    %v53 = vstv %s36
    %v54 = vmul.f32 %v53, %v51
    %v55 = vmul.f32 %v53, %v52
    %s56 = sld [smem:[#allocation2]]
    %s57 = sld [smem:[#allocation2 + $0x1]]
    %s58 = sld [smem:[#allocation2 + $0x2]]
    %vm59 = vcmask 64512
    %v61 = vsel %vm59, %v38, 0
    %63 = vmatprep.subr.mxu0 0.0
    %64 = vmatpush1.msra.mxu0 0.0
    %65 = vmatprep.subr.mxu0 0.0
    %66 = vmatpush1.msra.mxu0 0.0
    %67 = vmatprep.subr.mxu0 0.0
    %68 = vmatpush1.msra.mxu0 0.0
    %69 = vmatprep.subr.mxu0 0.0
    %70 = vmatpush1.msra.mxu0 0.0
    %71 = vmatprep.subr.mxu0 0.0
    %72 = vmatpush1.msra.mxu0 0.0
    %73 = vmatprep.subr.mxu0 0.0
    %74 = vmatpush1.msra.mxu0 0.0
    %75 = vmatprep.subr.mxu0 0.0
    %76 = vmatpush1.msra.mxu0 0.0
    %77 = vmatprep.subr.mxu0 0.0
    %78 = vmatpush1.msra.mxu0 0.0
    %79 = vmatprep.subr.mxu0 0.0
    %80 = vmatpush1.msra.mxu0 0.0
    %81 = vmatprep.subr.mxu0 0.0
    %82 = vmatpush1.msra.mxu0 0.0
    %83 = vmatprep.subr.mxu0 0.0
    %84 = vmatpush1.msra.mxu0 0.0
    %85 = vmatprep.subr.mxu0 0.0
    %86 = vmatpush1.msra.mxu0 0.0
    %87 = vmatprep.subr.mxu0 0.0
    %88 = vmatpush1.msra.mxu0 0.0
    %89 = vmatprep.subr.mxu0 0.0
    %90 = vmatpush1.msra.mxu0 0.0
    %91 = vmatprep.subr.mxu0 0.0
    %92 = vmatpush1.msra.mxu0 0.0
    %v93 = vand.u32 %v55, 4294901760
    %94 = vmatprep.subr.mxu0 %v93
    %v95 = vand.u32 %v54, 4294901760
    %96 = vmatpush1.msra.mxu0 %v95
    %97 = vmatprep.subr.mxu0 0.0
    %98 = vmatpush2.msra.mxu0 0.0
    %99 = vmatprep.subr.mxu0 0.0
    %100 = vmatpush2.msra.mxu0 0.0
    %101 = vmatprep.subr.mxu0 0.0
    %102 = vmatpush2.msra.mxu0 0.0
    %103 = vmatprep.subr.mxu0 0.0
    %104 = vmatpush2.msra.mxu0 0.0
    %105 = vmatprep.subr.mxu0 0.0
    %106 = vmatpush2.msra.mxu0 0.0
    %107 = vmatprep.subr.mxu0 0.0
    %108 = vmatpush2.msra.mxu0 0.0
    %109 = vmatprep.subr.mxu0 0.0
    %110 = vmatpush2.msra.mxu0 0.0
    %111 = vmatprep.subr.mxu0 0.0
    %112 = vmatpush2.msra.mxu0 0.0
    %113 = vmatprep.subr.mxu0 0.0
    %114 = vmatpush2.msra.mxu0 0.0
    %115 = vmatprep.subr.mxu0 0.0
    %116 = vmatpush2.msra.mxu0 0.0
    %117 = vmatprep.subr.mxu0 0.0
    %118 = vmatpush2.msra.mxu0 0.0
    %119 = vmatprep.subr.mxu0 0.0
    %120 = vmatpush2.msra.mxu0 0.0
    %121 = vmatprep.subr.mxu0 0.0
    %122 = vmatpush2.msra.mxu0 0.0
    %123 = vmatprep.subr.mxu0 0.0
    %124 = vmatpush2.msra.mxu0 0.0
    %125 = vmatprep.subr.mxu0 0.0
    %126 = vmatpush2.msra.mxu0 0.0
    %127 = vmatprep.subr.mxu0 0.0
    %128 = vmatpush2.msra.mxu0 0.0
    %129 = vmatprep.mubr.f32.mxu0 0.0
    %v130 = vand.u32 %v61, 4294901760
    %v131 = vsub.f32 %v61, %v130
    %v132 = vand.u32 %v131, 4294901760
    %v133 = vsub.f32 %v131, %v132
    %v134 = vand.u32 %v133, 4294901760
    %135 = vmatmul.mubr.f32.gmra.mxu0 %v134
    %v136 = vpop.f32.mrf.mxu0
    %v137 = vadd.f32 0.0, %v136
    %v138 = vpop.f32.mrf.mxu0
    %v139 = vadd.f32 0.0, %v138
    %140 = vdwg.mxu0
    %141 = vmatprep.subr.mxu0 0.0
    %142 = vmatpush1.msra.mxu0 0.0
    %143 = vmatprep.subr.mxu0 0.0
    %144 = vmatpush1.msra.mxu0 0.0
    %145 = vmatprep.subr.mxu0 0.0
    %146 = vmatpush1.msra.mxu0 0.0
    %147 = vmatprep.subr.mxu0 0.0
    %148 = vmatpush1.msra.mxu0 0.0
    %149 = vmatprep.subr.mxu0 0.0
    %150 = vmatpush1.msra.mxu0 0.0
    %151 = vmatprep.subr.mxu0 0.0
    %152 = vmatpush1.msra.mxu0 0.0
    %153 = vmatprep.subr.mxu0 0.0
    %154 = vmatpush1.msra.mxu0 0.0
    %155 = vmatprep.subr.mxu0 0.0
    %156 = vmatpush1.msra.mxu0 0.0
    %157 = vmatprep.subr.mxu0 0.0
    %158 = vmatpush1.msra.mxu0 0.0
    %159 = vmatprep.subr.mxu0 0.0
    %160 = vmatpush1.msra.mxu0 0.0
    %161 = vmatprep.subr.mxu0 0.0
    %162 = vmatpush1.msra.mxu0 0.0
    %163 = vmatprep.subr.mxu0 0.0
    %164 = vmatpush1.msra.mxu0 0.0
    %165 = vmatprep.subr.mxu0 0.0
    %166 = vmatpush1.msra.mxu0 0.0
    %167 = vmatprep.subr.mxu0 0.0
    %168 = vmatpush1.msra.mxu0 0.0
    %169 = vmatprep.subr.mxu0 0.0
    %170 = vmatpush1.msra.mxu0 0.0
    %v171 = vand.u32 %v55, 4294901760
    %v172 = vsub.f32 %v55, %v171
    %v173 = vand.u32 %v172, 4294901760
    %v174 = vsub.f32 %v172, %v173
    %v175 = vand.u32 %v174, 4294901760
    %176 = vmatprep.subr.mxu0 %v175
    %v177 = vand.u32 %v54, 4294901760
    %v178 = vsub.f32 %v54, %v177
    %v179 = vand.u32 %v178, 4294901760
    %v180 = vsub.f32 %v178, %v179
    %v181 = vand.u32 %v180, 4294901760
    %182 = vmatpush1.msra.mxu0 %v181
    %183 = vmatprep.subr.mxu0 0.0
    %184 = vmatpush2.msra.mxu0 0.0
    %185 = vmatprep.subr.mxu0 0.0
    %186 = vmatpush2.msra.mxu0 0.0
    %187 = vmatprep.subr.mxu0 0.0
    %188 = vmatpush2.msra.mxu0 0.0
    %189 = vmatprep.subr.mxu0 0.0
    %190 = vmatpush2.msra.mxu0 0.0
    %191 = vmatprep.subr.mxu0 0.0
    %192 = vmatpush2.msra.mxu0 0.0
    %193 = vmatprep.subr.mxu0 0.0
    %194 = vmatpush2.msra.mxu0 0.0
    %195 = vmatprep.subr.mxu0 0.0
    %196 = vmatpush2.msra.mxu0 0.0
    %197 = vmatprep.subr.mxu0 0.0
    %198 = vmatpush2.msra.mxu0 0.0
    %199 = vmatprep.subr.mxu0 0.0
    %200 = vmatpush2.msra.mxu0 0.0
    %201 = vmatprep.subr.mxu0 0.0
    %202 = vmatpush2.msra.mxu0 0.0
    %203 = vmatprep.subr.mxu0 0.0
    %204 = vmatpush2.msra.mxu0 0.0
    %205 = vmatprep.subr.mxu0 0.0
    %206 = vmatpush2.msra.mxu0 0.0
    %207 = vmatprep.subr.mxu0 0.0
    %208 = vmatpush2.msra.mxu0 0.0
    %209 = vmatprep.subr.mxu0 0.0
    %210 = vmatpush2.msra.mxu0 0.0
    %211 = vmatprep.subr.mxu0 0.0
    %212 = vmatpush2.msra.mxu0 0.0
    %213 = vmatprep.subr.mxu0 0.0
    %214 = vmatpush2.msra.mxu0 0.0
    %215 = vmatprep.mubr.f32.mxu0 0.0
    %v216 = vand.u32 %v61, 4294901760
    %217 = vmatmul.mubr.f32.gmra.mxu0 %v216
    %v218 = vpop.f32.mrf.mxu0
    %v219 = vadd.f32 %v137, %v218
    %v220 = vpop.f32.mrf.mxu0
    %v221 = vadd.f32 %v139, %v220
    %222 = vdwg.mxu0
    %223 = vmatprep.subr.mxu0 0.0
    %224 = vmatpush1.msra.mxu0 0.0
    %225 = vmatprep.subr.mxu0 0.0
    %226 = vmatpush1.msra.mxu0 0.0
    %227 = vmatprep.subr.mxu0 0.0
    %228 = vmatpush1.msra.mxu0 0.0
    %229 = vmatprep.subr.mxu0 0.0
    %230 = vmatpush1.msra.mxu0 0.0
    %231 = vmatprep.subr.mxu0 0.0
    %232 = vmatpush1.msra.mxu0 0.0
    %233 = vmatprep.subr.mxu0 0.0
    %234 = vmatpush1.msra.mxu0 0.0
    %235 = vmatprep.subr.mxu0 0.0
    %236 = vmatpush1.msra.mxu0 0.0
    %237 = vmatprep.subr.mxu0 0.0
    %238 = vmatpush1.msra.mxu0 0.0
    %239 = vmatprep.subr.mxu0 0.0
    %240 = vmatpush1.msra.mxu0 0.0
    %241 = vmatprep.subr.mxu0 0.0
    %242 = vmatpush1.msra.mxu0 0.0
    %243 = vmatprep.subr.mxu0 0.0
    %244 = vmatpush1.msra.mxu0 0.0
    %245 = vmatprep.subr.mxu0 0.0
    %246 = vmatpush1.msra.mxu0 0.0
    %247 = vmatprep.subr.mxu0 0.0
    %248 = vmatpush1.msra.mxu0 0.0
    %249 = vmatprep.subr.mxu0 0.0
    %250 = vmatpush1.msra.mxu0 0.0
    %251 = vmatprep.subr.mxu0 0.0
    %252 = vmatpush1.msra.mxu0 0.0
    %v253 = vand.u32 %v55, 4294901760
    %v254 = vsub.f32 %v55, %v253
    %255 = vmatprep.subr.mxu0 %v254
    %v256 = vand.u32 %v54, 4294901760
    %v257 = vsub.f32 %v54, %v256
    %258 = vmatpush1.msra.mxu0 %v257
    %259 = vmatprep.subr.mxu0 0.0
    %260 = vmatpush2.msra.mxu0 0.0
    %261 = vmatprep.subr.mxu0 0.0
    %262 = vmatpush2.msra.mxu0 0.0
    %263 = vmatprep.subr.mxu0 0.0
    %264 = vmatpush2.msra.mxu0 0.0
    %265 = vmatprep.subr.mxu0 0.0
    %266 = vmatpush2.msra.mxu0 0.0
    %267 = vmatprep.subr.mxu0 0.0
    %268 = vmatpush2.msra.mxu0 0.0
    %269 = vmatprep.subr.mxu0 0.0
    %270 = vmatpush2.msra.mxu0 0.0
    %271 = vmatprep.subr.mxu0 0.0
    %272 = vmatpush2.msra.mxu0 0.0
    %273 = vmatprep.subr.mxu0 0.0
    %274 = vmatpush2.msra.mxu0 0.0
    %275 = vmatprep.subr.mxu0 0.0
    %276 = vmatpush2.msra.mxu0 0.0
    %277 = vmatprep.subr.mxu0 0.0
    %278 = vmatpush2.msra.mxu0 0.0
    %279 = vmatprep.subr.mxu0 0.0
    %280 = vmatpush2.msra.mxu0 0.0
    %281 = vmatprep.subr.mxu0 0.0
    %282 = vmatpush2.msra.mxu0 0.0
    %283 = vmatprep.subr.mxu0 0.0
    %284 = vmatpush2.msra.mxu0 0.0
    %285 = vmatprep.subr.mxu0 0.0
    %286 = vmatpush2.msra.mxu0 0.0
    %287 = vmatprep.subr.mxu0 0.0
    %288 = vmatpush2.msra.mxu0 0.0
    %289 = vmatprep.subr.mxu0 0.0
    %290 = vmatpush2.msra.mxu0 0.0
    %291 = vmatprep.mubr.f32.mxu0 0.0
    %v292 = vand.u32 %v61, 4294901760
    %v293 = vsub.f32 %v61, %v292
    %294 = vmatmul.mubr.f32.gmra.mxu0 %v293
    %v295 = vpop.f32.mrf.mxu0
    %v296 = vadd.f32 %v219, %v295
    %v297 = vpop.f32.mrf.mxu0
    %v298 = vadd.f32 %v221, %v297
    %299 = vdwg.mxu0
    %300 = vmatprep.subr.mxu0 0.0
    %301 = vmatpush1.msra.mxu0 0.0
    %302 = vmatprep.subr.mxu0 0.0
    %303 = vmatpush1.msra.mxu0 0.0
    %304 = vmatprep.subr.mxu0 0.0
    %305 = vmatpush1.msra.mxu0 0.0
    %306 = vmatprep.subr.mxu0 0.0
    %307 = vmatpush1.msra.mxu0 0.0
    %308 = vmatprep.subr.mxu0 0.0
    %309 = vmatpush1.msra.mxu0 0.0
    %310 = vmatprep.subr.mxu0 0.0
    %311 = vmatpush1.msra.mxu0 0.0
    %312 = vmatprep.subr.mxu0 0.0
    %313 = vmatpush1.msra.mxu0 0.0
    %314 = vmatprep.subr.mxu0 0.0
    %315 = vmatpush1.msra.mxu0 0.0
    %316 = vmatprep.subr.mxu0 0.0
    %317 = vmatpush1.msra.mxu0 0.0
    %318 = vmatprep.subr.mxu0 0.0
    %319 = vmatpush1.msra.mxu0 0.0
    %320 = vmatprep.subr.mxu0 0.0
    %321 = vmatpush1.msra.mxu0 0.0
    %322 = vmatprep.subr.mxu0 0.0
    %323 = vmatpush1.msra.mxu0 0.0
    %324 = vmatprep.subr.mxu0 0.0
    %325 = vmatpush1.msra.mxu0 0.0
    %326 = vmatprep.subr.mxu0 0.0
    %327 = vmatpush1.msra.mxu0 0.0
    %328 = vmatprep.subr.mxu0 0.0
    %329 = vmatpush1.msra.mxu0 0.0
    %v330 = vand.u32 %v55, 4294901760
    %331 = vmatprep.subr.mxu0 %v330
    %v332 = vand.u32 %v54, 4294901760
    %333 = vmatpush1.msra.mxu0 %v332
    %334 = vmatprep.subr.mxu0 0.0
    %335 = vmatpush2.msra.mxu0 0.0
    %336 = vmatprep.subr.mxu0 0.0
    %337 = vmatpush2.msra.mxu0 0.0
    %338 = vmatprep.subr.mxu0 0.0
    %339 = vmatpush2.msra.mxu0 0.0
    %340 = vmatprep.subr.mxu0 0.0
    %341 = vmatpush2.msra.mxu0 0.0
    %342 = vmatprep.subr.mxu0 0.0
    %343 = vmatpush2.msra.mxu0 0.0
    %344 = vmatprep.subr.mxu0 0.0
    %345 = vmatpush2.msra.mxu0 0.0
    %346 = vmatprep.subr.mxu0 0.0
    %347 = vmatpush2.msra.mxu0 0.0
    %348 = vmatprep.subr.mxu0 0.0
    %349 = vmatpush2.msra.mxu0 0.0
    %350 = vmatprep.subr.mxu0 0.0
    %351 = vmatpush2.msra.mxu0 0.0
    %352 = vmatprep.subr.mxu0 0.0
    %353 = vmatpush2.msra.mxu0 0.0
    %354 = vmatprep.subr.mxu0 0.0
    %355 = vmatpush2.msra.mxu0 0.0
    %356 = vmatprep.subr.mxu0 0.0
    %357 = vmatpush2.msra.mxu0 0.0
    %358 = vmatprep.subr.mxu0 0.0
    %359 = vmatpush2.msra.mxu0 0.0
    %360 = vmatprep.subr.mxu0 0.0
    %361 = vmatpush2.msra.mxu0 0.0
    %362 = vmatprep.subr.mxu0 0.0
    %363 = vmatpush2.msra.mxu0 0.0
    %364 = vmatprep.subr.mxu0 0.0
    %365 = vmatpush2.msra.mxu0 0.0
    %366 = vmatprep.mubr.f32.mxu0 0.0
    %v367 = vand.u32 %v61, 4294901760
    %v368 = vsub.f32 %v61, %v367
    %v369 = vand.u32 %v368, 4294901760
    %370 = vmatmul.mubr.f32.gmra.mxu0 %v369
    %v371 = vpop.f32.mrf.mxu0
    %v372 = vadd.f32 %v296, %v371
    %v373 = vpop.f32.mrf.mxu0
    %v374 = vadd.f32 %v298, %v373
    %375 = vdwg.mxu0
    %376 = vmatprep.subr.mxu0 0.0
    %377 = vmatpush1.msra.mxu0 0.0
    %378 = vmatprep.subr.mxu0 0.0
    %379 = vmatpush1.msra.mxu0 0.0
    %380 = vmatprep.subr.mxu0 0.0
    %381 = vmatpush1.msra.mxu0 0.0
    %382 = vmatprep.subr.mxu0 0.0
    %383 = vmatpush1.msra.mxu0 0.0
    %384 = vmatprep.subr.mxu0 0.0
    %385 = vmatpush1.msra.mxu0 0.0
    %386 = vmatprep.subr.mxu0 0.0
    %387 = vmatpush1.msra.mxu0 0.0
    %388 = vmatprep.subr.mxu0 0.0
    %389 = vmatpush1.msra.mxu0 0.0
    %390 = vmatprep.subr.mxu0 0.0
    %391 = vmatpush1.msra.mxu0 0.0
    %392 = vmatprep.subr.mxu0 0.0
    %393 = vmatpush1.msra.mxu0 0.0
    %394 = vmatprep.subr.mxu0 0.0
    %395 = vmatpush1.msra.mxu0 0.0
    %396 = vmatprep.subr.mxu0 0.0
    %397 = vmatpush1.msra.mxu0 0.0
    %398 = vmatprep.subr.mxu0 0.0
    %399 = vmatpush1.msra.mxu0 0.0
    %400 = vmatprep.subr.mxu0 0.0
    %401 = vmatpush1.msra.mxu0 0.0
    %402 = vmatprep.subr.mxu0 0.0
    %403 = vmatpush1.msra.mxu0 0.0
    %404 = vmatprep.subr.mxu0 0.0
    %405 = vmatpush1.msra.mxu0 0.0
    %v406 = vand.u32 %v55, 4294901760
    %v407 = vsub.f32 %v55, %v406
    %v408 = vand.u32 %v407, 4294901760
    %409 = vmatprep.subr.mxu0 %v408
    %v410 = vand.u32 %v54, 4294901760
    %v411 = vsub.f32 %v54, %v410
    %v412 = vand.u32 %v411, 4294901760
    %413 = vmatpush1.msra.mxu0 %v412
    %414 = vmatprep.subr.mxu0 0.0
    %415 = vmatpush2.msra.mxu0 0.0
    %416 = vmatprep.subr.mxu0 0.0
    %417 = vmatpush2.msra.mxu0 0.0
    %418 = vmatprep.subr.mxu0 0.0
    %419 = vmatpush2.msra.mxu0 0.0
    %420 = vmatprep.subr.mxu0 0.0
    %421 = vmatpush2.msra.mxu0 0.0
    %422 = vmatprep.subr.mxu0 0.0
    %423 = vmatpush2.msra.mxu0 0.0
    %424 = vmatprep.subr.mxu0 0.0
    %425 = vmatpush2.msra.mxu0 0.0
    %426 = vmatprep.subr.mxu0 0.0
    %427 = vmatpush2.msra.mxu0 0.0
    %428 = vmatprep.subr.mxu0 0.0
    %429 = vmatpush2.msra.mxu0 0.0
    %430 = vmatprep.subr.mxu0 0.0
    %431 = vmatpush2.msra.mxu0 0.0
    %432 = vmatprep.subr.mxu0 0.0
    %433 = vmatpush2.msra.mxu0 0.0
    %434 = vmatprep.subr.mxu0 0.0
    %435 = vmatpush2.msra.mxu0 0.0
    %436 = vmatprep.subr.mxu0 0.0
    %437 = vmatpush2.msra.mxu0 0.0
    %438 = vmatprep.subr.mxu0 0.0
    %439 = vmatpush2.msra.mxu0 0.0
    %440 = vmatprep.subr.mxu0 0.0
    %441 = vmatpush2.msra.mxu0 0.0
    %442 = vmatprep.subr.mxu0 0.0
    %443 = vmatpush2.msra.mxu0 0.0
    %444 = vmatprep.subr.mxu0 0.0
    %445 = vmatpush2.msra.mxu0 0.0
    %446 = vmatprep.mubr.f32.mxu0 0.0
    %v447 = vand.u32 %v61, 4294901760
    %448 = vmatmul.mubr.f32.gmra.mxu0 %v447
    %v449 = vpop.f32.mrf.mxu0
    %v450 = vadd.f32 %v372, %v449
    %v451 = vpop.f32.mrf.mxu0
    %v452 = vadd.f32 %v374, %v451
    %453 = vdwg.mxu0
    %454 = vmatprep.subr.mxu0 0.0
    %455 = vmatpush1.msra.mxu0 0.0
    %456 = vmatprep.subr.mxu0 0.0
    %457 = vmatpush1.msra.mxu0 0.0
    %458 = vmatprep.subr.mxu0 0.0
    %459 = vmatpush1.msra.mxu0 0.0
    %460 = vmatprep.subr.mxu0 0.0
    %461 = vmatpush1.msra.mxu0 0.0
    %462 = vmatprep.subr.mxu0 0.0
    %463 = vmatpush1.msra.mxu0 0.0
    %464 = vmatprep.subr.mxu0 0.0
    %465 = vmatpush1.msra.mxu0 0.0
    %466 = vmatprep.subr.mxu0 0.0
    %467 = vmatpush1.msra.mxu0 0.0
    %468 = vmatprep.subr.mxu0 0.0
    %469 = vmatpush1.msra.mxu0 0.0
    %470 = vmatprep.subr.mxu0 0.0
    %471 = vmatpush1.msra.mxu0 0.0
    %472 = vmatprep.subr.mxu0 0.0
    %473 = vmatpush1.msra.mxu0 0.0
    %474 = vmatprep.subr.mxu0 0.0
    %475 = vmatpush1.msra.mxu0 0.0
    %476 = vmatprep.subr.mxu0 0.0
    %477 = vmatpush1.msra.mxu0 0.0
    %478 = vmatprep.subr.mxu0 0.0
    %479 = vmatpush1.msra.mxu0 0.0
    %480 = vmatprep.subr.mxu0 0.0
    %481 = vmatpush1.msra.mxu0 0.0
    %482 = vmatprep.subr.mxu0 0.0
    %483 = vmatpush1.msra.mxu0 0.0
    %v484 = vand.u32 %v55, 4294901760
    %485 = vmatprep.subr.mxu0 %v484
    %v486 = vand.u32 %v54, 4294901760
    %487 = vmatpush1.msra.mxu0 %v486
    %488 = vmatprep.subr.mxu0 0.0
    %489 = vmatpush2.msra.mxu0 0.0
    %490 = vmatprep.subr.mxu0 0.0
    %491 = vmatpush2.msra.mxu0 0.0
    %492 = vmatprep.subr.mxu0 0.0
    %493 = vmatpush2.msra.mxu0 0.0
    %494 = vmatprep.subr.mxu0 0.0
    %495 = vmatpush2.msra.mxu0 0.0
    %496 = vmatprep.subr.mxu0 0.0
    %497 = vmatpush2.msra.mxu0 0.0
    %498 = vmatprep.subr.mxu0 0.0
    %499 = vmatpush2.msra.mxu0 0.0
    %500 = vmatprep.subr.mxu0 0.0
    %501 = vmatpush2.msra.mxu0 0.0
    %502 = vmatprep.subr.mxu0 0.0
    %503 = vmatpush2.msra.mxu0 0.0
    %504 = vmatprep.subr.mxu0 0.0
    %505 = vmatpush2.msra.mxu0 0.0
    %506 = vmatprep.subr.mxu0 0.0
    %507 = vmatpush2.msra.mxu0 0.0
    %508 = vmatprep.subr.mxu0 0.0
    %509 = vmatpush2.msra.mxu0 0.0
    %510 = vmatprep.subr.mxu0 0.0
    %511 = vmatpush2.msra.mxu0 0.0
    %512 = vmatprep.subr.mxu0 0.0
    %513 = vmatpush2.msra.mxu0 0.0
    %514 = vmatprep.subr.mxu0 0.0
    %515 = vmatpush2.msra.mxu0 0.0
    %516 = vmatprep.subr.mxu0 0.0
    %517 = vmatpush2.msra.mxu0 0.0
    %518 = vmatprep.subr.mxu0 0.0
    %519 = vmatpush2.msra.mxu0 0.0
    %520 = vmatprep.mubr.f32.mxu0 0.0
    %v521 = vand.u32 %v61, 4294901760
    %522 = vmatmul.mubr.f32.gmra.mxu0 %v521
    %v523 = vpop.f32.mrf.mxu0
    %v524 = vadd.f32 %v450, %v523
    %v525 = vpop.f32.mrf.mxu0
    %v526 = vadd.f32 %v452, %v525
    %527 = vdwg.mxu0
    %v528 = vstv %s56
    %v529 = vmul.f32 %v528, %v54
    %v530 = vmul.f32 %v528, %v55
    %v531 = vstv %s57
    %v532 = vmul.f32 %v531, %v524
    %v533 = vmul.f32 %v531, %v526
    %v534 = vsub.f32 %v529, %v532
    %v535 = vsub.f32 %v530, %v533
    %v536 = vmul.f32 %v44, %v534
    %v537 = vmul.f32 %v48, %v535
    %v538 = vstv %s58
    %v539 = vmul.f32 %v538, %v536
    %v540 = vmul.f32 %v538, %v537
    %v541 = vld [vmem:[%s4] sm:$0xff]
    %v542 = vld [vmem:[%s4 + $0x8] sm:$0xff]
    %v543 = vadd.f32 %v539, %v541
    %v544 = vadd.f32 %v540, %v542
    %s545 = sld [smem:[#allocation2 + $0x4]]
    %s546 = sld [smem:[#allocation2 + $0x5]]
    %547 = vmatprep.subr.mxu0 0.0
    %548 = vmatpush1.msra.mxu0 0.0
    %549 = vmatprep.subr.mxu0 0.0
    %550 = vmatpush1.msra.mxu0 0.0
    %551 = vmatprep.subr.mxu0 0.0
    %552 = vmatpush1.msra.mxu0 0.0
    %553 = vmatprep.subr.mxu0 0.0
    %554 = vmatpush1.msra.mxu0 0.0
    %555 = vmatprep.subr.mxu0 0.0
    %556 = vmatpush1.msra.mxu0 0.0
    %557 = vmatprep.subr.mxu0 0.0
    %558 = vmatpush1.msra.mxu0 0.0
    %559 = vmatprep.subr.mxu0 0.0
    %560 = vmatpush1.msra.mxu0 0.0
    %561 = vmatprep.subr.mxu0 0.0
    %562 = vmatpush1.msra.mxu0 0.0
    %563 = vmatprep.subr.mxu0 0.0
    %564 = vmatpush1.msra.mxu0 0.0
    %565 = vmatprep.subr.mxu0 0.0
    %566 = vmatpush1.msra.mxu0 0.0
    %567 = vmatprep.subr.mxu0 0.0
    %568 = vmatpush1.msra.mxu0 0.0
    %569 = vmatprep.subr.mxu0 0.0
    %570 = vmatpush1.msra.mxu0 0.0
    %571 = vmatprep.subr.mxu0 0.0
    %572 = vmatpush1.msra.mxu0 0.0
    %573 = vmatprep.subr.mxu0 0.0
    %574 = vmatpush1.msra.mxu0 0.0
    %575 = vmatprep.subr.mxu0 0.0
    %576 = vmatpush1.msra.mxu0 0.0
    %v577 = vand.u32 %v544, 4294901760
    %578 = vmatprep.subr.mxu0 %v577
    %v579 = vand.u32 %v543, 4294901760
    %580 = vmatpush1.msra.mxu0 %v579
    %581 = vmatprep.subr.mxu0 0.0
    %582 = vmatpush2.msra.mxu0 0.0
    %583 = vmatprep.subr.mxu0 0.0
    %584 = vmatpush2.msra.mxu0 0.0
    %585 = vmatprep.subr.mxu0 0.0
    %586 = vmatpush2.msra.mxu0 0.0
    %587 = vmatprep.subr.mxu0 0.0
    %588 = vmatpush2.msra.mxu0 0.0
    %589 = vmatprep.subr.mxu0 0.0
    %590 = vmatpush2.msra.mxu0 0.0
    %591 = vmatprep.subr.mxu0 0.0
    %592 = vmatpush2.msra.mxu0 0.0
    %593 = vmatprep.subr.mxu0 0.0
    %594 = vmatpush2.msra.mxu0 0.0
    %595 = vmatprep.subr.mxu0 0.0
    %596 = vmatpush2.msra.mxu0 0.0
    %597 = vmatprep.subr.mxu0 0.0
    %598 = vmatpush2.msra.mxu0 0.0
    %599 = vmatprep.subr.mxu0 0.0
    %600 = vmatpush2.msra.mxu0 0.0
    %601 = vmatprep.subr.mxu0 0.0
    %602 = vmatpush2.msra.mxu0 0.0
    %603 = vmatprep.subr.mxu0 0.0
    %604 = vmatpush2.msra.mxu0 0.0
    %605 = vmatprep.subr.mxu0 0.0
    %606 = vmatpush2.msra.mxu0 0.0
    %607 = vmatprep.subr.mxu0 0.0
    %608 = vmatpush2.msra.mxu0 0.0
    %609 = vmatprep.subr.mxu0 0.0
    %610 = vmatpush2.msra.mxu0 0.0
    %611 = vmatprep.subr.mxu0 0.0
    %612 = vmatpush2.msra.mxu0 0.0
    %613 = vmatprep.mubr.f32.mxu0 0.0
    %v614 = vand.u32 %v61, 4294901760
    %v615 = vsub.f32 %v61, %v614
    %v616 = vand.u32 %v615, 4294901760
    %v617 = vsub.f32 %v615, %v616
    %v618 = vand.u32 %v617, 4294901760
    %619 = vmatmul.mubr.f32.gmra.mxu0 %v618
    %v620 = vpop.f32.mrf.mxu0
    %v621 = vadd.f32 0.0, %v620
    %v622 = vpop.f32.mrf.mxu0
    %v623 = vadd.f32 0.0, %v622
    %624 = vdwg.mxu0
    %625 = vmatprep.subr.mxu0 0.0
    %626 = vmatpush1.msra.mxu0 0.0
    %627 = vmatprep.subr.mxu0 0.0
    %628 = vmatpush1.msra.mxu0 0.0
    %629 = vmatprep.subr.mxu0 0.0
    %630 = vmatpush1.msra.mxu0 0.0
    %631 = vmatprep.subr.mxu0 0.0
    %632 = vmatpush1.msra.mxu0 0.0
    %633 = vmatprep.subr.mxu0 0.0
    %634 = vmatpush1.msra.mxu0 0.0
    %635 = vmatprep.subr.mxu0 0.0
    %636 = vmatpush1.msra.mxu0 0.0
    %637 = vmatprep.subr.mxu0 0.0
    %638 = vmatpush1.msra.mxu0 0.0
    %639 = vmatprep.subr.mxu0 0.0
    %640 = vmatpush1.msra.mxu0 0.0
    %641 = vmatprep.subr.mxu0 0.0
    %642 = vmatpush1.msra.mxu0 0.0
    %643 = vmatprep.subr.mxu0 0.0
    %644 = vmatpush1.msra.mxu0 0.0
    %645 = vmatprep.subr.mxu0 0.0
    %646 = vmatpush1.msra.mxu0 0.0
    %647 = vmatprep.subr.mxu0 0.0
    %648 = vmatpush1.msra.mxu0 0.0
    %649 = vmatprep.subr.mxu0 0.0
    %650 = vmatpush1.msra.mxu0 0.0
    %651 = vmatprep.subr.mxu0 0.0
    %652 = vmatpush1.msra.mxu0 0.0
    %653 = vmatprep.subr.mxu0 0.0
    %654 = vmatpush1.msra.mxu0 0.0
    %v655 = vand.u32 %v544, 4294901760
    %v656 = vsub.f32 %v544, %v655
    %v657 = vand.u32 %v656, 4294901760
    %v658 = vsub.f32 %v656, %v657
    %v659 = vand.u32 %v658, 4294901760
    %660 = vmatprep.subr.mxu0 %v659
    %v661 = vand.u32 %v543, 4294901760
    %v662 = vsub.f32 %v543, %v661
    %v663 = vand.u32 %v662, 4294901760
    %v664 = vsub.f32 %v662, %v663
    %v665 = vand.u32 %v664, 4294901760
    %666 = vmatpush1.msra.mxu0 %v665
    %667 = vmatprep.subr.mxu0 0.0
    %668 = vmatpush2.msra.mxu0 0.0
    %669 = vmatprep.subr.mxu0 0.0
    %670 = vmatpush2.msra.mxu0 0.0
    %671 = vmatprep.subr.mxu0 0.0
    %672 = vmatpush2.msra.mxu0 0.0
    %673 = vmatprep.subr.mxu0 0.0
    %674 = vmatpush2.msra.mxu0 0.0
    %675 = vmatprep.subr.mxu0 0.0
    %676 = vmatpush2.msra.mxu0 0.0
    %677 = vmatprep.subr.mxu0 0.0
    %678 = vmatpush2.msra.mxu0 0.0
    %679 = vmatprep.subr.mxu0 0.0
    %680 = vmatpush2.msra.mxu0 0.0
    %681 = vmatprep.subr.mxu0 0.0
    %682 = vmatpush2.msra.mxu0 0.0
    %683 = vmatprep.subr.mxu0 0.0
    %684 = vmatpush2.msra.mxu0 0.0
    %685 = vmatprep.subr.mxu0 0.0
    %686 = vmatpush2.msra.mxu0 0.0
    %687 = vmatprep.subr.mxu0 0.0
    %688 = vmatpush2.msra.mxu0 0.0
    %689 = vmatprep.subr.mxu0 0.0
    %690 = vmatpush2.msra.mxu0 0.0
    %691 = vmatprep.subr.mxu0 0.0
    %692 = vmatpush2.msra.mxu0 0.0
    %693 = vmatprep.subr.mxu0 0.0
    %694 = vmatpush2.msra.mxu0 0.0
    %695 = vmatprep.subr.mxu0 0.0
    %696 = vmatpush2.msra.mxu0 0.0
    %697 = vmatprep.subr.mxu0 0.0
    %698 = vmatpush2.msra.mxu0 0.0
    %699 = vmatprep.mubr.f32.mxu0 0.0
    %v700 = vand.u32 %v61, 4294901760
    %701 = vmatmul.mubr.f32.gmra.mxu0 %v700
    %v702 = vpop.f32.mrf.mxu0
    %v703 = vadd.f32 %v621, %v702
    %v704 = vpop.f32.mrf.mxu0
    %v705 = vadd.f32 %v623, %v704
    %706 = vdwg.mxu0
    %707 = vmatprep.subr.mxu0 0.0
    %708 = vmatpush1.msra.mxu0 0.0
    %709 = vmatprep.subr.mxu0 0.0
    %710 = vmatpush1.msra.mxu0 0.0
    %711 = vmatprep.subr.mxu0 0.0
    %712 = vmatpush1.msra.mxu0 0.0
    %713 = vmatprep.subr.mxu0 0.0
    %714 = vmatpush1.msra.mxu0 0.0
    %715 = vmatprep.subr.mxu0 0.0
    %716 = vmatpush1.msra.mxu0 0.0
    %717 = vmatprep.subr.mxu0 0.0
    %718 = vmatpush1.msra.mxu0 0.0
    %719 = vmatprep.subr.mxu0 0.0
    %720 = vmatpush1.msra.mxu0 0.0
    %721 = vmatprep.subr.mxu0 0.0
    %722 = vmatpush1.msra.mxu0 0.0
    %723 = vmatprep.subr.mxu0 0.0
    %724 = vmatpush1.msra.mxu0 0.0
    %725 = vmatprep.subr.mxu0 0.0
    %726 = vmatpush1.msra.mxu0 0.0
    %727 = vmatprep.subr.mxu0 0.0
    %728 = vmatpush1.msra.mxu0 0.0
    %729 = vmatprep.subr.mxu0 0.0
    %730 = vmatpush1.msra.mxu0 0.0
    %731 = vmatprep.subr.mxu0 0.0
    %732 = vmatpush1.msra.mxu0 0.0
    %733 = vmatprep.subr.mxu0 0.0
    %734 = vmatpush1.msra.mxu0 0.0
    %735 = vmatprep.subr.mxu0 0.0
    %736 = vmatpush1.msra.mxu0 0.0
    %v737 = vand.u32 %v544, 4294901760
    %v738 = vsub.f32 %v544, %v737
    %739 = vmatprep.subr.mxu0 %v738
    %v740 = vand.u32 %v543, 4294901760
    %v741 = vsub.f32 %v543, %v740
    %742 = vmatpush1.msra.mxu0 %v741
    %743 = vmatprep.subr.mxu0 0.0
    %744 = vmatpush2.msra.mxu0 0.0
    %745 = vmatprep.subr.mxu0 0.0
    %746 = vmatpush2.msra.mxu0 0.0
    %747 = vmatprep.subr.mxu0 0.0
    %748 = vmatpush2.msra.mxu0 0.0
    %749 = vmatprep.subr.mxu0 0.0
    %750 = vmatpush2.msra.mxu0 0.0
    %751 = vmatprep.subr.mxu0 0.0
    %752 = vmatpush2.msra.mxu0 0.0
    %753 = vmatprep.subr.mxu0 0.0
    %754 = vmatpush2.msra.mxu0 0.0
    %755 = vmatprep.subr.mxu0 0.0
    %756 = vmatpush2.msra.mxu0 0.0
    %757 = vmatprep.subr.mxu0 0.0
    %758 = vmatpush2.msra.mxu0 0.0
    %759 = vmatprep.subr.mxu0 0.0
    %760 = vmatpush2.msra.mxu0 0.0
    %761 = vmatprep.subr.mxu0 0.0
    %762 = vmatpush2.msra.mxu0 0.0
    %763 = vmatprep.subr.mxu0 0.0
    %764 = vmatpush2.msra.mxu0 0.0
    %765 = vmatprep.subr.mxu0 0.0
    %766 = vmatpush2.msra.mxu0 0.0
    %767 = vmatprep.subr.mxu0 0.0
    %768 = vmatpush2.msra.mxu0 0.0
    %769 = vmatprep.subr.mxu0 0.0
    %770 = vmatpush2.msra.mxu0 0.0
    %771 = vmatprep.subr.mxu0 0.0
    %772 = vmatpush2.msra.mxu0 0.0
    %773 = vmatprep.subr.mxu0 0.0
    %774 = vmatpush2.msra.mxu0 0.0
    %775 = vmatprep.mubr.f32.mxu0 0.0
    %v776 = vand.u32 %v61, 4294901760
    %v777 = vsub.f32 %v61, %v776
    %778 = vmatmul.mubr.f32.gmra.mxu0 %v777
    %v779 = vpop.f32.mrf.mxu0
    %v780 = vadd.f32 %v703, %v779
    %v781 = vpop.f32.mrf.mxu0
    %v782 = vadd.f32 %v705, %v781
    %783 = vdwg.mxu0
    %784 = vmatprep.subr.mxu0 0.0
    %785 = vmatpush1.msra.mxu0 0.0
    %786 = vmatprep.subr.mxu0 0.0
    %787 = vmatpush1.msra.mxu0 0.0
    %788 = vmatprep.subr.mxu0 0.0
    %789 = vmatpush1.msra.mxu0 0.0
    %790 = vmatprep.subr.mxu0 0.0
    %791 = vmatpush1.msra.mxu0 0.0
    %792 = vmatprep.subr.mxu0 0.0
    %793 = vmatpush1.msra.mxu0 0.0
    %794 = vmatprep.subr.mxu0 0.0
    %795 = vmatpush1.msra.mxu0 0.0
    %796 = vmatprep.subr.mxu0 0.0
    %797 = vmatpush1.msra.mxu0 0.0
    %798 = vmatprep.subr.mxu0 0.0
    %799 = vmatpush1.msra.mxu0 0.0
    %800 = vmatprep.subr.mxu0 0.0
    %801 = vmatpush1.msra.mxu0 0.0
    %802 = vmatprep.subr.mxu0 0.0
    %803 = vmatpush1.msra.mxu0 0.0
    %804 = vmatprep.subr.mxu0 0.0
    %805 = vmatpush1.msra.mxu0 0.0
    %806 = vmatprep.subr.mxu0 0.0
    %807 = vmatpush1.msra.mxu0 0.0
    %808 = vmatprep.subr.mxu0 0.0
    %809 = vmatpush1.msra.mxu0 0.0
    %810 = vmatprep.subr.mxu0 0.0
    %811 = vmatpush1.msra.mxu0 0.0
    %812 = vmatprep.subr.mxu0 0.0
    %813 = vmatpush1.msra.mxu0 0.0
    %v814 = vand.u32 %v544, 4294901760
    %815 = vmatprep.subr.mxu0 %v814
    %v816 = vand.u32 %v543, 4294901760
    %817 = vmatpush1.msra.mxu0 %v816
    %818 = vmatprep.subr.mxu0 0.0
    %819 = vmatpush2.msra.mxu0 0.0
    %820 = vmatprep.subr.mxu0 0.0
    %821 = vmatpush2.msra.mxu0 0.0
    %822 = vmatprep.subr.mxu0 0.0
    %823 = vmatpush2.msra.mxu0 0.0
    %824 = vmatprep.subr.mxu0 0.0
    %825 = vmatpush2.msra.mxu0 0.0
    %826 = vmatprep.subr.mxu0 0.0
    %827 = vmatpush2.msra.mxu0 0.0
    %828 = vmatprep.subr.mxu0 0.0
    %829 = vmatpush2.msra.mxu0 0.0
    %830 = vmatprep.subr.mxu0 0.0
    %831 = vmatpush2.msra.mxu0 0.0
    %832 = vmatprep.subr.mxu0 0.0
    %833 = vmatpush2.msra.mxu0 0.0
    %834 = vmatprep.subr.mxu0 0.0
    %835 = vmatpush2.msra.mxu0 0.0
    %836 = vmatprep.subr.mxu0 0.0
    %837 = vmatpush2.msra.mxu0 0.0
    %838 = vmatprep.subr.mxu0 0.0
    %839 = vmatpush2.msra.mxu0 0.0
    %840 = vmatprep.subr.mxu0 0.0
    %841 = vmatpush2.msra.mxu0 0.0
    %842 = vmatprep.subr.mxu0 0.0
    %843 = vmatpush2.msra.mxu0 0.0
    %844 = vmatprep.subr.mxu0 0.0
    %845 = vmatpush2.msra.mxu0 0.0
    %846 = vmatprep.subr.mxu0 0.0
    %847 = vmatpush2.msra.mxu0 0.0
    %848 = vmatprep.subr.mxu0 0.0
    %849 = vmatpush2.msra.mxu0 0.0
    %850 = vmatprep.mubr.f32.mxu0 0.0
    %v851 = vand.u32 %v61, 4294901760
    %v852 = vsub.f32 %v61, %v851
    %v853 = vand.u32 %v852, 4294901760
    %854 = vmatmul.mubr.f32.gmra.mxu0 %v853
    %v855 = vpop.f32.mrf.mxu0
    %v856 = vadd.f32 %v780, %v855
    %v857 = vpop.f32.mrf.mxu0
    %v858 = vadd.f32 %v782, %v857
    %859 = vdwg.mxu0
    %860 = vmatprep.subr.mxu0 0.0
    %861 = vmatpush1.msra.mxu0 0.0
    %862 = vmatprep.subr.mxu0 0.0
    %863 = vmatpush1.msra.mxu0 0.0
    %864 = vmatprep.subr.mxu0 0.0
    %865 = vmatpush1.msra.mxu0 0.0
    %866 = vmatprep.subr.mxu0 0.0
    %867 = vmatpush1.msra.mxu0 0.0
    %868 = vmatprep.subr.mxu0 0.0
    %869 = vmatpush1.msra.mxu0 0.0
    %870 = vmatprep.subr.mxu0 0.0
    %871 = vmatpush1.msra.mxu0 0.0
    %872 = vmatprep.subr.mxu0 0.0
    %873 = vmatpush1.msra.mxu0 0.0
    %874 = vmatprep.subr.mxu0 0.0
    %875 = vmatpush1.msra.mxu0 0.0
    %876 = vmatprep.subr.mxu0 0.0
    %877 = vmatpush1.msra.mxu0 0.0
    %878 = vmatprep.subr.mxu0 0.0
    %879 = vmatpush1.msra.mxu0 0.0
    %880 = vmatprep.subr.mxu0 0.0
    %881 = vmatpush1.msra.mxu0 0.0
    %882 = vmatprep.subr.mxu0 0.0
    %883 = vmatpush1.msra.mxu0 0.0
    %884 = vmatprep.subr.mxu0 0.0
    %885 = vmatpush1.msra.mxu0 0.0
    %886 = vmatprep.subr.mxu0 0.0
    %887 = vmatpush1.msra.mxu0 0.0
    %888 = vmatprep.subr.mxu0 0.0
    %889 = vmatpush1.msra.mxu0 0.0
    %v890 = vand.u32 %v544, 4294901760
    %v891 = vsub.f32 %v544, %v890
    %v892 = vand.u32 %v891, 4294901760
    %893 = vmatprep.subr.mxu0 %v892
    %v894 = vand.u32 %v543, 4294901760
    %v895 = vsub.f32 %v543, %v894
    %v896 = vand.u32 %v895, 4294901760
    %897 = vmatpush1.msra.mxu0 %v896
    %898 = vmatprep.subr.mxu0 0.0
    %899 = vmatpush2.msra.mxu0 0.0
    %900 = vmatprep.subr.mxu0 0.0
    %901 = vmatpush2.msra.mxu0 0.0
    %902 = vmatprep.subr.mxu0 0.0
    %903 = vmatpush2.msra.mxu0 0.0
    %904 = vmatprep.subr.mxu0 0.0
    %905 = vmatpush2.msra.mxu0 0.0
    %906 = vmatprep.subr.mxu0 0.0
    %907 = vmatpush2.msra.mxu0 0.0
    %908 = vmatprep.subr.mxu0 0.0
    %909 = vmatpush2.msra.mxu0 0.0
    %910 = vmatprep.subr.mxu0 0.0
    %911 = vmatpush2.msra.mxu0 0.0
    %912 = vmatprep.subr.mxu0 0.0
    %913 = vmatpush2.msra.mxu0 0.0
    %914 = vmatprep.subr.mxu0 0.0
    %915 = vmatpush2.msra.mxu0 0.0
    %916 = vmatprep.subr.mxu0 0.0
    %917 = vmatpush2.msra.mxu0 0.0
    %918 = vmatprep.subr.mxu0 0.0
    %919 = vmatpush2.msra.mxu0 0.0
    %920 = vmatprep.subr.mxu0 0.0
    %921 = vmatpush2.msra.mxu0 0.0
    %922 = vmatprep.subr.mxu0 0.0
    %923 = vmatpush2.msra.mxu0 0.0
    %924 = vmatprep.subr.mxu0 0.0
    %925 = vmatpush2.msra.mxu0 0.0
    %926 = vmatprep.subr.mxu0 0.0
    %927 = vmatpush2.msra.mxu0 0.0
    %928 = vmatprep.subr.mxu0 0.0
    %929 = vmatpush2.msra.mxu0 0.0
    %930 = vmatprep.mubr.f32.mxu0 0.0
    %v931 = vand.u32 %v61, 4294901760
    %932 = vmatmul.mubr.f32.gmra.mxu0 %v931
    %v933 = vpop.f32.mrf.mxu0
    %v934 = vadd.f32 %v856, %v933
    %v935 = vpop.f32.mrf.mxu0
    %v936 = vadd.f32 %v858, %v935
    %937 = vdwg.mxu0
    %938 = vmatprep.subr.mxu0 0.0
    %939 = vmatpush1.msra.mxu0 0.0
    %940 = vmatprep.subr.mxu0 0.0
    %941 = vmatpush1.msra.mxu0 0.0
    %942 = vmatprep.subr.mxu0 0.0
    %943 = vmatpush1.msra.mxu0 0.0
    %944 = vmatprep.subr.mxu0 0.0
    %945 = vmatpush1.msra.mxu0 0.0
    %946 = vmatprep.subr.mxu0 0.0
    %947 = vmatpush1.msra.mxu0 0.0
    %948 = vmatprep.subr.mxu0 0.0
    %949 = vmatpush1.msra.mxu0 0.0
    %950 = vmatprep.subr.mxu0 0.0
    %951 = vmatpush1.msra.mxu0 0.0
    %952 = vmatprep.subr.mxu0 0.0
    %953 = vmatpush1.msra.mxu0 0.0
    %954 = vmatprep.subr.mxu0 0.0
    %955 = vmatpush1.msra.mxu0 0.0
    %956 = vmatprep.subr.mxu0 0.0
    %957 = vmatpush1.msra.mxu0 0.0
    %958 = vmatprep.subr.mxu0 0.0
    %959 = vmatpush1.msra.mxu0 0.0
    %960 = vmatprep.subr.mxu0 0.0
    %961 = vmatpush1.msra.mxu0 0.0
    %962 = vmatprep.subr.mxu0 0.0
    %963 = vmatpush1.msra.mxu0 0.0
    %964 = vmatprep.subr.mxu0 0.0
    %965 = vmatpush1.msra.mxu0 0.0
    %966 = vmatprep.subr.mxu0 0.0
    %967 = vmatpush1.msra.mxu0 0.0
    %v968 = vand.u32 %v544, 4294901760
    %969 = vmatprep.subr.mxu0 %v968
    %v970 = vand.u32 %v543, 4294901760
    %971 = vmatpush1.msra.mxu0 %v970
    %972 = vmatprep.subr.mxu0 0.0
    %973 = vmatpush2.msra.mxu0 0.0
    %974 = vmatprep.subr.mxu0 0.0
    %975 = vmatpush2.msra.mxu0 0.0
    %976 = vmatprep.subr.mxu0 0.0
    %977 = vmatpush2.msra.mxu0 0.0
    %978 = vmatprep.subr.mxu0 0.0
    %979 = vmatpush2.msra.mxu0 0.0
    %980 = vmatprep.subr.mxu0 0.0
    %981 = vmatpush2.msra.mxu0 0.0
    %982 = vmatprep.subr.mxu0 0.0
    %983 = vmatpush2.msra.mxu0 0.0
    %984 = vmatprep.subr.mxu0 0.0
    %985 = vmatpush2.msra.mxu0 0.0
    %986 = vmatprep.subr.mxu0 0.0
    %987 = vmatpush2.msra.mxu0 0.0
    %988 = vmatprep.subr.mxu0 0.0
    %989 = vmatpush2.msra.mxu0 0.0
    %990 = vmatprep.subr.mxu0 0.0
    %991 = vmatpush2.msra.mxu0 0.0
    %992 = vmatprep.subr.mxu0 0.0
    %993 = vmatpush2.msra.mxu0 0.0
    %994 = vmatprep.subr.mxu0 0.0
    %995 = vmatpush2.msra.mxu0 0.0
    %996 = vmatprep.subr.mxu0 0.0
    %997 = vmatpush2.msra.mxu0 0.0
    %998 = vmatprep.subr.mxu0 0.0
    %999 = vmatpush2.msra.mxu0 0.0
    %1000 = vmatprep.subr.mxu0 0.0
    %1001 = vmatpush2.msra.mxu0 0.0
    %1002 = vmatprep.subr.mxu0 0.0
    %1003 = vmatpush2.msra.mxu0 0.0
    %1004 = vmatprep.mubr.f32.mxu0 0.0
    %v1005 = vand.u32 %v61, 4294901760
    %1006 = vmatmul.mubr.f32.gmra.mxu0 %v1005
    %v1007 = vpop.f32.mrf.mxu0
    %v1008 = vadd.f32 %v934, %v1007
    %v1009 = vpop.f32.mrf.mxu0
    %v1010 = vadd.f32 %v936, %v1009
    %1011 = vdwg.mxu0
    %v1012 = vstv %s545
    %v1013 = vmul.f32 %v1012, %v543
    %v1014 = vmul.f32 %v1012, %v544
    %v1015 = vstv %s546
    %v1016 = vmul.f32 %v1015, %v1008
    %v1017 = vmul.f32 %v1015, %v1010
    %v1018 = vsub.f32 %v1013, %v1016
    %v1019 = vsub.f32 %v1014, %v1017
    %v1020 = vld [vmem:[%s5] sm:$0xff]
    %v1021 = vld [vmem:[%s5 + $0x8] sm:$0xff]
    %v1022 = vmul.f32 %v44, %v1018
    %v1023 = vmul.f32 %v48, %v1019
    %v1024 = vstv %s37
    %v1025 = vmul.f32 %v1024, %v1022
    %v1026 = vmul.f32 %v1024, %v1023
    %v1027 = vadd.f32 %v1020, %v1025
    %v1028 = vadd.f32 %v1021, %v1026
    %1029 = vst [vmem:[%s6] sm:$0xff] %v1027
    %1030 = vst [vmem:[%s6 + $0x8] sm:$0xff] %v1028
    // Predicated region
    $region30: #{_run_impl.1} parent=1 // pred_check
      _
    $region31: #{_run_impl.1} parent=1 // pred_check_branch
      %1032 = sbr.rel (0) target = $region33
    $region32: #{_run_impl.1} parent=1 // pred_region
      _
    $region33: #{_run_impl.1} parent=1 // pred_fallthru
      _
    // Predicated region
    $region34: #{_run_impl.1} parent=1 // pred_check
      _
    $region35: #{_run_impl.1} parent=1 // pred_check_branch
      %1034 = sbr.rel (0) target = $region37
    $region36: #{_run_impl.1} parent=1 // pred_region
      _
    $region37: #{_run_impl.1} parent=1 // pred_fallthru
      _
    %1035 = vsyncpa [#allocation3], 1

</llo_original>
